<compile_context>
chip_gen: v7x
topology: tpu7x:2x2x1
jax: 0.10.0
libtpu: 0.0.40
codegen_flags: <defaults>
</compile_context>

<pallas_src>
import math
import functools

import jax
import jax.numpy as jnp
from jax import lax
from jax.experimental import pallas as pl
from jax.experimental.pallas import tpu as pltpu


_NEG_INF = -1e30  # large finite negative: avoids NaN from (-inf) - (-inf)


# --------------------------------------------------------------------------
# Prologue: Q = (x @ Wq) * scale, K = x @ Wk  (K doubles as V per reference)
# --------------------------------------------------------------------------
def _proj_kernel(x_ref, wq_ref, wk_ref, q_ref, k_ref, *, scale):
    # x_ref : (1, tile, E)   wq_ref / wk_ref : (E, H)
    x = x_ref[0]                                                   # (tile, E)
    q = jnp.dot(x, wq_ref[...], preferred_element_type=jnp.float32)
    k = jnp.dot(x, wk_ref[...], preferred_element_type=jnp.float32)
    # fold 1/sqrt(H) into Q once, here
    q_ref[0] = (q * scale).astype(q_ref.dtype)
    k_ref[0] = k.astype(k_ref.dtype)


# --------------------------------------------------------------------------
# Flash attention over pre-projected, pre-scaled Q and K (== V)
# --------------------------------------------------------------------------
def _attn_kernel(q_ref, k_ref, o_ref, m_sc, l_sc, acc_sc, *, approx_recip):
    # q_ref : (1, tq, H) resident across the kv axis
    # k_ref : (1, tk, H) streamed (index clamped to min(kv, qi))
    # o_ref : (1, tq, H)
    qi = pl.program_id(1)
    kv = pl.program_id(2)

    @pl.when(kv == 0)
    def _init():
        m_sc[...] = jnp.full_like(m_sc, _NEG_INF)
        l_sc[...] = jnp.zeros_like(l_sc)
        acc_sc[...] = jnp.zeros_like(acc_sc)

    def _flash_update(apply_causal_mask):
        q = q_ref[0]                                              # (tq, H)
        kvb = k_ref[0]                                            # (tk, H)
        # contract over the head dim without materializing k.T
        s = lax.dot_general(q, kvb, (((1,), (1,)), ((), ())),
                            preferred_element_type=jnp.float32)   # (tq, tk)
        if apply_causal_mask:
            # only the diagonal block needs the mask (tq == tk, block row/col
            # offsets coincide -> local indices suffice)
            row = lax.broadcasted_iota(jnp.int32, s.shape, 0)
            col = lax.broadcasted_iota(jnp.int32, s.shape, 1)
            s = jnp.where(col <= row, s, _NEG_INF)

        # online softmax update (all elementwise math in f32)
        m_prev = m_sc[...]
        m_new = jnp.maximum(m_prev, jnp.max(s, axis=-1, keepdims=True))
        alpha = jnp.exp(m_prev - m_new)
        p = jnp.exp(s - m_new)                                    # (tq, tk)
        l_sc[...] = alpha * l_sc[...] + jnp.sum(p, axis=-1, keepdims=True)
        acc_sc[...] = alpha * acc_sc[...] + jnp.dot(
            p.astype(kvb.dtype), kvb, preferred_element_type=jnp.float32)
        m_sc[...] = m_new

    # interior causal blocks: no mask work at all
    @pl.when(kv < qi)
    def _interior():
        _flash_update(apply_causal_mask=False)

    # diagonal block: masked update + finalize (last contributing kv block)
    @pl.when(kv == qi)
    def _diagonal():
        _flash_update(apply_causal_mask=True)
        inv_l = pl.reciprocal(l_sc[...], approx=approx_recip)
        # dropout: identity in inference mode
        o_ref[0] = (acc_sc[...] * inv_l).astype(o_ref.dtype)

    # kv > qi: fully masked block -> no compute; the clamped kv index_map
    # keeps the same (diagonal) K block resident so Pallas elides the DMA too.


def _round_up(n, m):
    return (n + m - 1) // m * m


@functools.partial(jax.jit, static_argnames=("block_size", "matmul_dtype"))
def head_forward(x, wq_t, wk_t, *, block_size=256, matmul_dtype=jnp.bfloat16):
    """x: (B, T, E), wq_t/wk_t: (E, H) pre-transposed weights -> (B, T, H)."""
    B, T, E = x.shape
    H = wq_t.shape[1]
    out_dtype = x.dtype
    scale = 1.0 / math.sqrt(H)

    # Tile selection: pad T up to a tile multiple rather than shrinking the
    # tile or using a whole-sequence tile.  Padded key columns are causally
    # masked for all valid rows; padded query rows are sliced off afterwards.
    tile = min(block_size, _round_up(T, 8))
    Tp = _round_up(T, tile)
    nt = Tp // tile

    # Single up-front cast of activations/weights to compute dtype.
    xc = x.astype(matmul_dtype)
    if Tp != T:
        xc = jnp.pad(xc, ((0, 0), (0, Tp - T), (0, 0)))
    wq_c = wq_t.astype(matmul_dtype)
    wk_c = wk_t.astype(matmul_dtype)

    # ---- prologue pallas_call: project Q (pre-scaled) and K (== V) once ----
    q, k = pl.pallas_call(
        functools.partial(_proj_kernel, scale=scale),
        out_shape=(jax.ShapeDtypeStruct((B, Tp, H), matmul_dtype),
                   jax.ShapeDtypeStruct((B, Tp, H), matmul_dtype)),
        grid=(B, nt),
        in_specs=[
            pl.BlockSpec((1, tile, E), lambda b, t: (b, t, 0)),   # x rows
            pl.BlockSpec((E, H), lambda b, t: (0, 0)),            # Wq^T
            pl.BlockSpec((E, H), lambda b, t: (0, 0)),            # Wk^T
        ],
        out_specs=(
            pl.BlockSpec((1, tile, H), lambda b, t: (b, t, 0)),
            pl.BlockSpec((1, tile, H), lambda b, t: (b, t, 0)),
        ),
        compiler_params=pltpu.CompilerParams(
            dimension_semantics=("parallel", "parallel")),
    )(xc, wq_c, wk_c)

    # ---- flash-attention pallas_call ----
    approx_recip = matmul_dtype != jnp.float32
    out = pl.pallas_call(
        functools.partial(_attn_kernel, approx_recip=approx_recip),
        out_shape=jax.ShapeDtypeStruct((B, Tp, H), out_dtype),
        grid_spec=pltpu.PrefetchScalarGridSpec(
            num_scalar_prefetch=0,
            grid=(B, nt, nt),
            in_specs=[
                # Q tile: resident across the whole kv axis
                pl.BlockSpec((1, tile, H), lambda b, qi, kv: (b, qi, 0)),
                # K (== V) tile: clamped so fully-masked (kv > qi) steps reuse
                # the already-resident diagonal block (DMA elided).
                # TODO(synk): add pipeline_mode=pl.Buffered(3) here if
                # profiling shows exposed DMA at long context.
                pl.BlockSpec((1, tile, H),
                             lambda b, qi, kv: (b, jnp.minimum(kv, qi), 0)),
            ],
            out_specs=pl.BlockSpec((1, tile, H), lambda b, qi, kv: (b, qi, 0)),
            scratch_shapes=[
                pltpu.VMEM((tile, 1), jnp.float32),   # running max
                pltpu.VMEM((tile, 1), jnp.float32),   # running denom
                pltpu.VMEM((tile, H), jnp.float32),   # output accumulator
            ],
        ),
        compiler_params=pltpu.CompilerParams(
            dimension_semantics=("parallel", "parallel", "arbitrary")),
    )(q, k)

    if Tp != T:
        out = out[:, :T, :]
    return out


def reference_forward(x, wq_t, wk_t):
    """Pure-JAX f32 reference mirroring the PyTorch module (eval mode)."""
    q = x @ wq_t
    k = x @ wk_t
    v = k                                       # faithful quirk: V = key(x)
    att = (q @ jnp.swapaxes(k, -1, -2)) * (1.0 / math.sqrt(k.shape[-1]))
    T = x.shape[1]
    mask = jnp.tril(jnp.ones((T, T), dtype=bool))
    att = jnp.where(mask[None, :, :], att, -jnp.inf)
    att = jax.nn.softmax(att, axis=-1)
    return att @ v


if __name__ == "__main__":
    key = jax.random.PRNGKey(0)
    keys = jax.random.split(key, 9)

    # ---- Test 1: small shapes implied by the module (bf16 MXU path) ----
    bs, n_ctx, embed_dim, head_dim = 2, 8, 32, 16
    x = jax.random.normal(keys[0], (bs, n_ctx, embed_dim), dtype=jnp.float32)
    bound = 1.0 / math.sqrt(embed_dim)
    wq_t = jax.random.uniform(keys[1], (embed_dim, head_dim), jnp.float32, -bound, bound)
    wk_t = jax.random.uniform(keys[2], (embed_dim, head_dim), jnp.float32, -bound, bound)

    out = jax.block_until_ready(head_forward(x, wq_t, wk_t))
    ref = reference_forward(x, wq_t, wk_t)
    assert out.shape == (bs, n_ctx, head_dim), out.shape
    # bf16 matmul operands (f32 accumulation) -> loose tolerance
    assert jnp.allclose(out, ref, atol=3e-2, rtol=3e-2), (
        "bf16 path mismatch, max abs diff = %f" % float(jnp.max(jnp.abs(out - ref))))

    # ---- Test 2: larger context exercising multi-tile flash + causal
    #      block skipping (f32 matmuls for a tighter numerical check) ----
    bs2, n_ctx2, embed_dim2, head_dim2 = 2, 256, 64, 32
    x2 = jax.random.normal(keys[3], (bs2, n_ctx2, embed_dim2), dtype=jnp.float32)
    bound2 = 1.0 / math.sqrt(embed_dim2)
    wq2 = jax.random.uniform(keys[4], (embed_dim2, head_dim2), jnp.float32, -bound2, bound2)
    wk2 = jax.random.uniform(keys[5], (embed_dim2, head_dim2), jnp.float32, -bound2, bound2)

    out2 = jax.block_until_ready(
        head_forward(x2, wq2, wk2, block_size=128, matmul_dtype=jnp.float32))
    ref2 = reference_forward(x2, wq2, wk2)
    assert out2.shape == (bs2, n_ctx2, head_dim2), out2.shape
    # tolerance allows for MXU pass decomposition of f32 matmuls while still
    # catching any masking / tiling / online-softmax bug (those are O(0.1+))
    assert jnp.allclose(out2, ref2, atol=1e-2, rtol=1e-2), (
        "tiled path mismatch, max abs diff = %f" % float(jnp.max(jnp.abs(out2 - ref2))))

    # ---- Test 3: non-tile-multiple context -> exercises the padding path ----
    bs3, n_ctx3, embed_dim3, head_dim3 = 2, 40, 32, 16
    x3 = jax.random.normal(keys[6], (bs3, n_ctx3, embed_dim3), dtype=jnp.float32)
    bound3 = 1.0 / math.sqrt(embed_dim3)
    wq3 = jax.random.uniform(keys[7], (embed_dim3, head_dim3), jnp.float32, -bound3, bound3)
    wk3 = jax.random.uniform(keys[8], (embed_dim3, head_dim3), jnp.float32, -bound3, bound3)

    out3 = jax.block_until_ready(
        head_forward(x3, wq3, wk3, block_size=32, matmul_dtype=jnp.float32))
    ref3 = reference_forward(x3, wq3, wk3)
    assert out3.shape == (bs3, n_ctx3, head_dim3), out3.shape
    assert jnp.allclose(out3, ref3, atol=1e-2, rtol=1e-2), (
        "padded path mismatch, max abs diff = %f" % float(jnp.max(jnp.abs(out3 - ref3))))

    print("KERNEL_OK")
</pallas_src>

<mosaic_0001>
module attributes {stable_mosaic.version = 11 : i64} {
  func.func @_proj_kernel(%arg0: i32, %arg1: i32, %arg2: memref<1x8x32xbf16, #tpu.memory_space<vmem>>, %arg3: memref<32x16xbf16, #tpu.memory_space<vmem>>, %arg4: memref<32x16xbf16, #tpu.memory_space<vmem>>, %arg5: memref<1x8x16xbf16, #tpu.memory_space<vmem>>, %arg6: memref<1x8x16xbf16, #tpu.memory_space<vmem>>) attributes {dimension_semantics = [#tpu.dimension_semantics<parallel>, #tpu.dimension_semantics<parallel>], iteration_bounds = array<i64: 2, 1>, scalar_prefetch = 0 : i64, scratch_operands = 0 : i64, tpu.core_type = #tpu.core_type<tc>, window_params = [{transform_indices = @transform_0, window_bounds = array<i64: 1, 8, 32>}, {pipeline_mode = #tpu.pipeline_mode<synchronous>, transform_indices = @transform_1, window_bounds = array<i64: 32, 16>}, {pipeline_mode = #tpu.pipeline_mode<synchronous>, transform_indices = @transform_2, window_bounds = array<i64: 32, 16>}, {transform_indices = @transform_3, window_bounds = array<i64: 1, 8, 16>}, {transform_indices = @transform_4, window_bounds = array<i64: 1, 8, 16>}]} {
    %c0 = arith.constant 0 : index
    %c0_0 = arith.constant 0 : index
    %c0_1 = arith.constant 0 : index
    %0 = vector.load %arg2[%c0, %c0_0, %c0_1] : memref<1x8x32xbf16, #tpu.memory_space<vmem>>, vector<1x8x32xbf16>
    %1 = vector.shape_cast %0 : vector<1x8x32xbf16> to vector<8x32xbf16>
    %c0_2 = arith.constant 0 : index
    %c0_3 = arith.constant 0 : index
    %2 = vector.load %arg3[%c0_2, %c0_3] : memref<32x16xbf16, #tpu.memory_space<vmem>>, vector<32x16xbf16>
    %cst = arith.constant dense<0.000000e+00> : vector<8x16xf32>
    %3 = tpu.matmul %1, %2, %cst {dimension_numbers = #tpu.dot_dimension_numbers<[1], [0], [0], [1], [0, 0, 1, 1], [], []>} : vector<8x32xbf16>, vector<32x16xbf16>, vector<8x16xf32> -> vector<8x16xf32>
    %c0_4 = arith.constant 0 : index
    %c0_5 = arith.constant 0 : index
    %4 = vector.load %arg4[%c0_4, %c0_5] : memref<32x16xbf16, #tpu.memory_space<vmem>>, vector<32x16xbf16>
    %cst_6 = arith.constant dense<0.000000e+00> : vector<8x16xf32>
    %5 = tpu.matmul %1, %4, %cst_6 {dimension_numbers = #tpu.dot_dimension_numbers<[1], [0], [0], [1], [0, 0, 1, 1], [], []>} : vector<8x32xbf16>, vector<32x16xbf16>, vector<8x16xf32> -> vector<8x16xf32>
    %cst_7 = arith.constant 2.500000e-01 : f32
    %6 = vector.broadcast %cst_7 : f32 to vector<8x16xf32>
    %7 = arith.mulf %3, %6 : vector<8x16xf32>
    %8 = arith.truncf %7 : vector<8x16xf32> to vector<8x16xbf16>
    %c0_8 = arith.constant 0 : index
    %c0_9 = arith.constant 0 : index
    %c0_10 = arith.constant 0 : index
    %9 = vector.load %arg5[%c0_8, %c0_9, %c0_10] : memref<1x8x16xbf16, #tpu.memory_space<vmem>>, vector<1x8x16xbf16>
    %10 = vector.shape_cast %9 : vector<1x8x16xbf16> to vector<8x16xbf16>
    %11 = vector.shape_cast %8 : vector<8x16xbf16> to vector<1x8x16xbf16>
    tpu.vector_store %arg5[%c0_8, %c0_9, %c0_10], %11 {strides = array<i32>} : memref<1x8x16xbf16, #tpu.memory_space<vmem>>, vector<1x8x16xbf16>,
    %12 = arith.truncf %5 : vector<8x16xf32> to vector<8x16xbf16>
    %c0_11 = arith.constant 0 : index
    %c0_12 = arith.constant 0 : index
    %c0_13 = arith.constant 0 : index
    %13 = vector.load %arg6[%c0_11, %c0_12, %c0_13] : memref<1x8x16xbf16, #tpu.memory_space<vmem>>, vector<1x8x16xbf16>
    %14 = vector.shape_cast %13 : vector<1x8x16xbf16> to vector<8x16xbf16>
    %15 = vector.shape_cast %12 : vector<8x16xbf16> to vector<1x8x16xbf16>
    tpu.vector_store %arg6[%c0_11, %c0_12, %c0_13], %15 {strides = array<i32>} : memref<1x8x16xbf16, #tpu.memory_space<vmem>>, vector<1x8x16xbf16>,
    return
  }
  func.func @transform_0(%arg0: i32, %arg1: i32) -> (i32, i32, i32) {
    %c0_i32 = arith.constant 0 : i32
    %c0_i32_0 = arith.constant 0 : i32
    return %arg0, %arg1, %c0_i32 : i32, i32, i32
  }
  func.func @transform_1(%arg0: i32, %arg1: i32) -> (i32, i32) {
    %c0_i32 = arith.constant 0 : i32
    %c0_i32_0 = arith.constant 0 : i32
    %c0_i32_1 = arith.constant 0 : i32
    return %c0_i32, %c0_i32_0 : i32, i32
  }
  func.func @transform_2(%arg0: i32, %arg1: i32) -> (i32, i32) {
    %c0_i32 = arith.constant 0 : i32
    %c0_i32_0 = arith.constant 0 : i32
    %c0_i32_1 = arith.constant 0 : i32
    return %c0_i32, %c0_i32_0 : i32, i32
  }
  func.func @transform_3(%arg0: i32, %arg1: i32) -> (i32, i32, i32) {
    %c0_i32 = arith.constant 0 : i32
    %c0_i32_0 = arith.constant 0 : i32
    return %arg0, %arg1, %c0_i32 : i32, i32, i32
  }
  func.func @transform_4(%arg0: i32, %arg1: i32) -> (i32, i32, i32) {
    %c0_i32 = arith.constant 0 : i32
    %c0_i32_0 = arith.constant 0 : i32
    return %arg0, %arg1, %c0_i32 : i32, i32, i32
  }
}

module attributes {stable_mosaic.version = 11 : i64} {
  func.func @_attn_kernel(%arg0: i32, %arg1: i32, %arg2: i32, %arg3: memref<1x8x16xbf16, #tpu.memory_space<vmem>>, %arg4: memref<1x8x16xbf16, #tpu.memory_space<vmem>>, %arg5: memref<1x8x16xf32, #tpu.memory_space<vmem>>, %arg6: memref<8x1xf32, #tpu.memory_space<vmem>>, %arg7: memref<8x1xf32, #tpu.memory_space<vmem>>, %arg8: memref<8x16xf32, #tpu.memory_space<vmem>>) attributes {dimension_semantics = [#tpu.dimension_semantics<parallel>, #tpu.dimension_semantics<parallel>, #tpu.dimension_semantics<arbitrary>], iteration_bounds = array<i64: 2, 1, 1>, scalar_prefetch = 0 : i64, scratch_operands = 3 : i64, tpu.core_type = #tpu.core_type<tc>, window_params = [{transform_indices = @transform_0, window_bounds = array<i64: 1, 8, 16>}, {transform_indices = @transform_1, window_bounds = array<i64: 1, 8, 16>}, {transform_indices = @transform_2, window_bounds = array<i64: 1, 8, 16>}]} {
    %c0_i32 = arith.constant 0 : i32
    %0 = arith.cmpi eq, %arg2, %c0_i32 : i32
    %1 = arith.extui %0 : i1 to i32
    %c0_i32_0 = arith.constant 0 : i32
    %2 = arith.cmpi ne, %1, %c0_i32_0 : i32
    scf.if %2 {
      %cst = arith.constant -1.000000e+30 : f32
      %9 = vector.broadcast %cst : f32 to vector<8x1xf32>
      %c0 = arith.constant 0 : index
      %c0_3 = arith.constant 0 : index
      %10 = vector.load %arg6[%c0, %c0_3] : memref<8x1xf32, #tpu.memory_space<vmem>>, vector<8x1xf32>
      tpu.vector_store %arg6[%c0, %c0_3], %9 {strides = array<i32>} : memref<8x1xf32, #tpu.memory_space<vmem>>, vector<8x1xf32>,
      %cst_4 = arith.constant 0.000000e+00 : f32
      %11 = vector.broadcast %cst_4 : f32 to vector<8x1xf32>
      %c0_5 = arith.constant 0 : index
      %c0_6 = arith.constant 0 : index
      %12 = vector.load %arg7[%c0_5, %c0_6] : memref<8x1xf32, #tpu.memory_space<vmem>>, vector<8x1xf32>
      tpu.vector_store %arg7[%c0_5, %c0_6], %11 {strides = array<i32>} : memref<8x1xf32, #tpu.memory_space<vmem>>, vector<8x1xf32>,
      %cst_7 = arith.constant 0.000000e+00 : f32
      %13 = vector.broadcast %cst_7 : f32 to vector<8x16xf32>
      %c0_8 = arith.constant 0 : index
      %c0_9 = arith.constant 0 : index
      %14 = vector.load %arg8[%c0_8, %c0_9] : memref<8x16xf32, #tpu.memory_space<vmem>>, vector<8x16xf32>
      tpu.vector_store %arg8[%c0_8, %c0_9], %13 {strides = array<i32>} : memref<8x16xf32, #tpu.memory_space<vmem>>, vector<8x16xf32>,
    } else {
    }
    %3 = arith.cmpi slt, %arg2, %arg1 : i32
    %4 = arith.extui %3 : i1 to i32
    %c0_i32_1 = arith.constant 0 : i32
    %5 = arith.cmpi ne, %4, %c0_i32_1 : i32
    scf.if %5 {
      %c0 = arith.constant 0 : index
      %c0_3 = arith.constant 0 : index
      %c0_4 = arith.constant 0 : index
      %9 = vector.load %arg3[%c0, %c0_3, %c0_4] : memref<1x8x16xbf16, #tpu.memory_space<vmem>>, vector<1x8x16xbf16>
      %10 = vector.shape_cast %9 : vector<1x8x16xbf16> to vector<8x16xbf16>
      %c0_5 = arith.constant 0 : index
      %c0_6 = arith.constant 0 : index
      %c0_7 = arith.constant 0 : index
      %11 = vector.load %arg4[%c0_5, %c0_6, %c0_7] : memref<1x8x16xbf16, #tpu.memory_space<vmem>>, vector<1x8x16xbf16>
      %12 = vector.shape_cast %11 : vector<1x8x16xbf16> to vector<8x16xbf16>
      %cst = arith.constant dense<0.000000e+00> : vector<8x8xf32>
      %13 = tpu.matmul %10, %12, %cst {dimension_numbers = #tpu.dot_dimension_numbers<[1], [1], [0], [0], [0, 0, 1, 0], [], []>} : vector<8x16xbf16>, vector<8x16xbf16>, vector<8x8xf32> -> vector<8x8xf32>
      %c0_8 = arith.constant 0 : index
      %c0_9 = arith.constant 0 : index
      %14 = vector.load %arg6[%c0_8, %c0_9] : memref<8x1xf32, #tpu.memory_space<vmem>>, vector<8x1xf32>
      %cst_10 = arith.constant dense<0xFF800000> : vector<8xf32>
      %15 = vector.multi_reduction <maximumf>, %13, %cst_10 [1] : vector<8x8xf32> to vector<8xf32>
      %16 = vector.shape_cast %15 : vector<8xf32> to vector<8x1xf32>
      %17 = arith.maximumf %14, %16 : vector<8x1xf32>
      %18 = arith.subf %14, %17 : vector<8x1xf32>
      %19 = math.exp %18 : vector<8x1xf32>
      %20 = vector.broadcast %17 : vector<8x1xf32> to vector<8x8xf32>
      %21 = arith.subf %13, %20 : vector<8x8xf32>
      %22 = math.exp %21 : vector<8x8xf32>
      %c0_11 = arith.constant 0 : index
      %c0_12 = arith.constant 0 : index
      %23 = vector.load %arg7[%c0_11, %c0_12] : memref<8x1xf32, #tpu.memory_space<vmem>>, vector<8x1xf32>
      %24 = arith.mulf %19, %23 : vector<8x1xf32>
      %cst_13 = arith.constant dense<0.000000e+00> : vector<8xf32>
      %25 = vector.multi_reduction <add>, %22, %cst_13 [1] : vector<8x8xf32> to vector<8xf32>
      %26 = vector.shape_cast %25 : vector<8xf32> to vector<8x1xf32>
      %27 = arith.addf %24, %26 : vector<8x1xf32>
      %c0_14 = arith.constant 0 : index
      %c0_15 = arith.constant 0 : index
      %28 = vector.load %arg7[%c0_14, %c0_15] : memref<8x1xf32, #tpu.memory_space<vmem>>, vector<8x1xf32>
      tpu.vector_store %arg7[%c0_14, %c0_15], %27 {strides = array<i32>} : memref<8x1xf32, #tpu.memory_space<vmem>>, vector<8x1xf32>,
      %c0_16 = arith.constant 0 : index
      %c0_17 = arith.constant 0 : index
      %29 = vector.load %arg8[%c0_16, %c0_17] : memref<8x16xf32, #tpu.memory_space<vmem>>, vector<8x16xf32>
      %30 = vector.broadcast %19 : vector<8x1xf32> to vector<8x16xf32>
      %31 = arith.mulf %30, %29 : vector<8x16xf32>
      %32 = arith.truncf %22 : vector<8x8xf32> to vector<8x8xbf16>
      %cst_18 = arith.constant dense<0.000000e+00> : vector<8x16xf32>
      %33 = tpu.matmul %32, %12, %cst_18 {dimension_numbers = #tpu.dot_dimension_numbers<[1], [0], [0], [1], [0, 0, 1, 1], [], []>} : vector<8x8xbf16>, vector<8x16xbf16>, vector<8x16xf32> -> vector<8x16xf32>
      %34 = arith.addf %31, %33 : vector<8x16xf32>
      %c0_19 = arith.constant 0 : index
      %c0_20 = arith.constant 0 : index
      %35 = vector.load %arg8[%c0_19, %c0_20] : memref<8x16xf32, #tpu.memory_space<vmem>>, vector<8x16xf32>
      tpu.vector_store %arg8[%c0_19, %c0_20], %34 {strides = array<i32>} : memref<8x16xf32, #tpu.memory_space<vmem>>, vector<8x16xf32>,
      %c0_21 = arith.constant 0 : index
      %c0_22 = arith.constant 0 : index
      %36 = vector.load %arg6[%c0_21, %c0_22] : memref<8x1xf32, #tpu.memory_space<vmem>>, vector<8x1xf32>
      tpu.vector_store %arg6[%c0_21, %c0_22], %17 {strides = array<i32>} : memref<8x1xf32, #tpu.memory_space<vmem>>, vector<8x1xf32>,
    } else {
    }
    %6 = arith.cmpi eq, %arg2, %arg1 : i32
    %7 = arith.extui %6 : i1 to i32
    %c0_i32_2 = arith.constant 0 : i32
    %8 = arith.cmpi ne, %7, %c0_i32_2 : i32
    scf.if %8 {
      %c0 = arith.constant 0 : index
      %c0_3 = arith.constant 0 : index
      %c0_4 = arith.constant 0 : index
      %9 = vector.load %arg3[%c0, %c0_3, %c0_4] : memref<1x8x16xbf16, #tpu.memory_space<vmem>>, vector<1x8x16xbf16>
      %10 = vector.shape_cast %9 : vector<1x8x16xbf16> to vector<8x16xbf16>
      %c0_5 = arith.constant 0 : index
      %c0_6 = arith.constant 0 : index
      %c0_7 = arith.constant 0 : index
      %11 = vector.load %arg4[%c0_5, %c0_6, %c0_7] : memref<1x8x16xbf16, #tpu.memory_space<vmem>>, vector<1x8x16xbf16>
      %12 = vector.shape_cast %11 : vector<1x8x16xbf16> to vector<8x16xbf16>
      %cst = arith.constant dense<0.000000e+00> : vector<8x8xf32>
      %13 = tpu.matmul %10, %12, %cst {dimension_numbers = #tpu.dot_dimension_numbers<[1], [1], [0], [0], [0, 0, 1, 0], [], []>} : vector<8x16xbf16>, vector<8x16xbf16>, vector<8x8xf32> -> vector<8x8xf32>
      %14 = tpu.iota {dimensions = array<i32: 0>} : vector<8x8xi32>
      %15 = tpu.iota {dimensions = array<i32: 1>} : vector<8x8xi32>
      %16 = arith.cmpi sle, %15, %14 : vector<8x8xi32>
      %cst_8 = arith.constant -1.000000e+30 : f32
      %17 = vector.broadcast %cst_8 : f32 to vector<8x8xf32>
      %18 = arith.select %16, %13, %17 : vector<8x8xi1>, vector<8x8xf32>
      %c0_9 = arith.constant 0 : index
      %c0_10 = arith.constant 0 : index
      %19 = vector.load %arg6[%c0_9, %c0_10] : memref<8x1xf32, #tpu.memory_space<vmem>>, vector<8x1xf32>
      %cst_11 = arith.constant dense<0xFF800000> : vector<8xf32>
      %20 = vector.multi_reduction <maximumf>, %18, %cst_11 [1] : vector<8x8xf32> to vector<8xf32>
      %21 = vector.shape_cast %20 : vector<8xf32> to vector<8x1xf32>
      %22 = arith.maximumf %19, %21 : vector<8x1xf32>
      %23 = arith.subf %19, %22 : vector<8x1xf32>
      %24 = math.exp %23 : vector<8x1xf32>
      %25 = vector.broadcast %22 : vector<8x1xf32> to vector<8x8xf32>
      %26 = arith.subf %18, %25 : vector<8x8xf32>
      %27 = math.exp %26 : vector<8x8xf32>
      %c0_12 = arith.constant 0 : index
      %c0_13 = arith.constant 0 : index
      %28 = vector.load %arg7[%c0_12, %c0_13] : memref<8x1xf32, #tpu.memory_space<vmem>>, vector<8x1xf32>
      %29 = arith.mulf %24, %28 : vector<8x1xf32>
      %cst_14 = arith.constant dense<0.000000e+00> : vector<8xf32>
      %30 = vector.multi_reduction <add>, %27, %cst_14 [1] : vector<8x8xf32> to vector<8xf32>
      %31 = vector.shape_cast %30 : vector<8xf32> to vector<8x1xf32>
      %32 = arith.addf %29, %31 : vector<8x1xf32>
      %c0_15 = arith.constant 0 : index
      %c0_16 = arith.constant 0 : index
      %33 = vector.load %arg7[%c0_15, %c0_16] : memref<8x1xf32, #tpu.memory_space<vmem>>, vector<8x1xf32>
      tpu.vector_store %arg7[%c0_15, %c0_16], %32 {strides = array<i32>} : memref<8x1xf32, #tpu.memory_space<vmem>>, vector<8x1xf32>,
      %c0_17 = arith.constant 0 : index
      %c0_18 = arith.constant 0 : index
      %34 = vector.load %arg8[%c0_17, %c0_18] : memref<8x16xf32, #tpu.memory_space<vmem>>, vector<8x16xf32>
      %35 = vector.broadcast %24 : vector<8x1xf32> to vector<8x16xf32>
      %36 = arith.mulf %35, %34 : vector<8x16xf32>
      %37 = arith.truncf %27 : vector<8x8xf32> to vector<8x8xbf16>
      %cst_19 = arith.constant dense<0.000000e+00> : vector<8x16xf32>
      %38 = tpu.matmul %37, %12, %cst_19 {dimension_numbers = #tpu.dot_dimension_numbers<[1], [0], [0], [1], [0, 0, 1, 1], [], []>} : vector<8x8xbf16>, vector<8x16xbf16>, vector<8x16xf32> -> vector<8x16xf32>
      %39 = arith.addf %36, %38 : vector<8x16xf32>
      %c0_20 = arith.constant 0 : index
      %c0_21 = arith.constant 0 : index
      %40 = vector.load %arg8[%c0_20, %c0_21] : memref<8x16xf32, #tpu.memory_space<vmem>>, vector<8x16xf32>
      tpu.vector_store %arg8[%c0_20, %c0_21], %39 {strides = array<i32>} : memref<8x16xf32, #tpu.memory_space<vmem>>, vector<8x16xf32>,
      %c0_22 = arith.constant 0 : index
      %c0_23 = arith.constant 0 : index
      %41 = vector.load %arg6[%c0_22, %c0_23] : memref<8x1xf32, #tpu.memory_space<vmem>>, vector<8x1xf32>
      tpu.vector_store %arg6[%c0_22, %c0_23], %22 {strides = array<i32>} : memref<8x1xf32, #tpu.memory_space<vmem>>, vector<8x1xf32>,
      %c0_24 = arith.constant 0 : index
      %c0_25 = arith.constant 0 : index
      %42 = vector.load %arg7[%c0_24, %c0_25] : memref<8x1xf32, #tpu.memory_space<vmem>>, vector<8x1xf32>
      %43 = tpu.reciprocal %42 {approx = true} : vector<8x1xf32> -> vector<8x1xf32>
      %c0_26 = arith.constant 0 : index
      %c0_27 = arith.constant 0 : index
      %44 = vector.load %arg8[%c0_26, %c0_27] : memref<8x16xf32, #tpu.memory_space<vmem>>, vector<8x16xf32>
      %45 = vector.broadcast %43 : vector<8x1xf32> to vector<8x16xf32>
      %46 = arith.mulf %44, %45 : vector<8x16xf32>
      %c0_28 = arith.constant 0 : index
      %c0_29 = arith.constant 0 : index
      %c0_30 = arith.constant 0 : index
      %47 = vector.load %arg5[%c0_28, %c0_29, %c0_30] : memref<1x8x16xf32, #tpu.memory_space<vmem>>, vector<1x8x16xf32>
      %48 = vector.shape_cast %47 : vector<1x8x16xf32> to vector<8x16xf32>
      %49 = vector.shape_cast %46 : vector<8x16xf32> to vector<1x8x16xf32>
      tpu.vector_store %arg5[%c0_28, %c0_29, %c0_30], %49 {strides = array<i32>} : memref<1x8x16xf32, #tpu.memory_space<vmem>>, vector<1x8x16xf32>,
    } else {
    }
    return
  }
  func.func @transform_0(%arg0: i32, %arg1: i32, %arg2: i32) -> (i32, i32, i32) {
    %c0_i32 = arith.constant 0 : i32
    %c0_i32_0 = arith.constant 0 : i32
    return %arg0, %arg1, %c0_i32 : i32, i32, i32
  }
  func.func @transform_1(%arg0: i32, %arg1: i32, %arg2: i32) -> (i32, i32, i32) {
    %0 = arith.minsi %arg2, %arg1 : i32
    %c0_i32 = arith.constant 0 : i32
    %c0_i32_0 = arith.constant 0 : i32
    return %arg0, %0, %c0_i32 : i32, i32, i32
  }
  func.func @transform_2(%arg0: i32, %arg1: i32, %arg2: i32) -> (i32, i32, i32) {
    %c0_i32 = arith.constant 0 : i32
    %c0_i32_0 = arith.constant 0 : i32
    return %arg0, %arg1, %c0_i32 : i32, i32, i32
  }
}

</mosaic_0001>

<llo_original>
// kernel: head_forward.2
$region0: #{head_forward.2}
  #allocation0 [shape = 'u32[]', space=smem, size = 0x4, offset = 0x4, fixed_abs, tag = 'smem constant byte address 0x4 - core index']
  #allocation1 [shape = 'u32[144,128]{1,0:T(1,128)}', space=vmem, size = 0x12000, scoped, tag = 'internal scratch']
  %s0 = inlined_call_operand.vmem [shape: bf16[2,8,32], index: 0, kind: input, shape index: {}]
  %s1 = inlined_call_operand.vmem [shape: bf16[32,16], index: 1, kind: input, shape index: {}]
  %s2 = inlined_call_operand.vmem [shape: bf16[32,16], index: 2, kind: input, shape index: {}]
  %s3 = inlined_call_operand.vmem [shape: bf16[2,8,16], index: 3, kind: output, shape index: {0}]
  %s4 = inlined_call_operand.vmem [shape: bf16[2,8,16], index: 4, kind: output, shape index: {1}]
  %5 = xla_tuple %s3, %s4
  %s6 = sld [smem:[#allocation0]]
  $region53: #{head_forward.2} parent=0
    _
  %s8 = ssub.s32 1, %s6
  %s9 = scalar_select 0, %s8, %s6
  loop: start=0, step=1, limit=4
  $region2: #{head_forward.2} parent=0 // loop_pre_header
    _
  $region3: #{head_forward.2} parent=0 // loop_header
    %s11 = sphi 0, %s15
    %p12 = scmp.ge.s32.totalorder %s11, 4
    %s18 = sphi 0, %s30
    %s19 = sphi 0, %s26
    %s20 = sphi 0, %s18
    %s21 = sphi 0, %s19
    %s22 = sphi 0, %s20
    %s23 = sphi 0, %s21
    %s35 = sphi 0, %s37
    %s38 = sphi 0, %s35
    %s39 = sphi 0, %s38
    %s55 = sphi 0, %s39
    %s59 = sphi 0, %s59
    %s61 = sphi 0, %s59
    %s62 = sphi 0, %s61
    %s76 = sphi 0, %s62
    %s80 = sphi 0, %s80
    %s82 = sphi 0, %s80
    %s83 = sphi 0, %s82
    %s97 = sphi 0, %s83
    %s105 = sphi 0, %s107
    %s108 = sphi 0, %s105
    %s109 = sphi 0, %s108
    %s125 = sphi 0, %s109
    %s133 = sphi 0, %s135
    %s136 = sphi 0, %s133
    %s137 = sphi 0, %s136
    %s153 = sphi 0, %s137
  $region4: #{head_forward.2} parent=0 // loop_header_branch
    %14 = sbr.rel (%p12) target = $region8
  $region5: #{head_forward.2} parent=0 // loop_body
    %s16 = ssub.s32 %s11, 1
    %s17 = ssub.s32 %s11, 2
    %s24 = sadd.s32 1, %s19
    %p25 = scmp.ge.s32.totalorder %s24, 1
    %s26 = scalar_select %p25, 0, %s24
    %s27 = sadd.s32 1, %s18
    %s28 = scalar_select %p25, %s27, %s18
    %p29 = scmp.ge.s32.totalorder %s28, 2
    %s30 = scalar_select %p29, 0, %s28
    %s31 = ssub.s32 %s18, %s30
    %s32 = ssub.s32 %s19, %s26
    %s33 = sor.u32 %s31, %s32
    %p34 = scmp.eq.s32.totalorder %s33, 0
    %s36 = sadd.s32 %s35, 1
    %s37 = scalar_select %p34, %s35, %s36
    %p40 = pneg %p34
    %p41 = scmp.eq.s32.totalorder %s11, 1
    %p42 = por %p40, %p41
    %p43 = scmp.ne.s32.totalorder %s35, %s38
    %p44 = scmp.eq.s32.totalorder %s11, 0
    %p45 = por %p43, %p44
    %p46 = scmp.ne.s32.totalorder %s35, %s38
    %p47 = scmp.eq.s32.totalorder %s16, 1
    %p48 = por %p46, %p47
    %p49 = scmp.ne.s32.totalorder %s38, %s39
    %p50 = scmp.eq.s32.totalorder %s16, 0
    %p51 = por %p49, %p50
    %p52 = scmp.ne.s32.totalorder %s38, %s39
    %p53 = scmp.eq.s32.totalorder %s17, 1
    %p54 = por %p52, %p53
    %p56 = scmp.ne.s32.totalorder %s39, %s55
    %p57 = scmp.eq.s32.totalorder %s17, 0
    %p58 = por %p56, %p57
    %s60 = sadd.s32 %s59, 1
    %p63 = scmp.eq.s32.totalorder %s11, 1
    %p64 = scmp.ne.s32.totalorder %s59, %s61
    %p65 = scmp.eq.s32.totalorder %s11, 0
    %p66 = por %p64, %p65
    %p67 = scmp.ne.s32.totalorder %s59, %s61
    %p68 = scmp.eq.s32.totalorder %s16, 1
    %p69 = por %p67, %p68
    %p70 = scmp.ne.s32.totalorder %s61, %s62
    %p71 = scmp.eq.s32.totalorder %s16, 0
    %p72 = por %p70, %p71
    %p73 = scmp.ne.s32.totalorder %s61, %s62
    %p74 = scmp.eq.s32.totalorder %s17, 1
    %p75 = por %p73, %p74
    %p77 = scmp.ne.s32.totalorder %s62, %s76
    %p78 = scmp.eq.s32.totalorder %s17, 0
    %p79 = por %p77, %p78
    %s81 = sadd.s32 %s80, 1
    %p84 = scmp.eq.s32.totalorder %s11, 1
    %p85 = scmp.ne.s32.totalorder %s80, %s82
    %p86 = scmp.eq.s32.totalorder %s11, 0
    %p87 = por %p85, %p86
    %p88 = scmp.ne.s32.totalorder %s80, %s82
    %p89 = scmp.eq.s32.totalorder %s16, 1
    %p90 = por %p88, %p89
    %p91 = scmp.ne.s32.totalorder %s82, %s83
    %p92 = scmp.eq.s32.totalorder %s16, 0
    %p93 = por %p91, %p92
    %p94 = scmp.ne.s32.totalorder %s82, %s83
    %p95 = scmp.eq.s32.totalorder %s17, 1
    %p96 = por %p94, %p95
    %p98 = scmp.ne.s32.totalorder %s83, %s97
    %p99 = scmp.eq.s32.totalorder %s17, 0
    %p100 = por %p98, %p99
    %s101 = ssub.s32 %s18, %s30
    %s102 = ssub.s32 %s19, %s26
    %s103 = sor.u32 %s101, %s102
    %p104 = scmp.eq.s32.totalorder %s103, 0
    %s106 = sadd.s32 %s105, 1
    %s107 = scalar_select %p104, %s105, %s106
    %p110 = pneg %p104
    %p111 = scmp.eq.s32.totalorder %s11, 1
    %p112 = por %p110, %p111
    %p113 = scmp.ne.s32.totalorder %s105, %s108
    %p114 = scmp.eq.s32.totalorder %s11, 0
    %p115 = por %p113, %p114
    %p116 = scmp.ne.s32.totalorder %s105, %s108
    %p117 = scmp.eq.s32.totalorder %s16, 1
    %p118 = por %p116, %p117
    %p119 = scmp.ne.s32.totalorder %s108, %s109
    %p120 = scmp.eq.s32.totalorder %s16, 0
    %p121 = por %p119, %p120
    %p122 = scmp.ne.s32.totalorder %s108, %s109
    %p123 = scmp.eq.s32.totalorder %s17, 1
    %p124 = por %p122, %p123
    %p126 = scmp.ne.s32.totalorder %s109, %s125
    %p127 = scmp.eq.s32.totalorder %s17, 0
    %p128 = por %p126, %p127
    %s129 = ssub.s32 %s18, %s30
    %s130 = ssub.s32 %s19, %s26
    %s131 = sor.u32 %s129, %s130
    %p132 = scmp.eq.s32.totalorder %s131, 0
    %s134 = sadd.s32 %s133, 1
    %s135 = scalar_select %p132, %s133, %s134
    %p138 = pneg %p132
    %p139 = scmp.eq.s32.totalorder %s11, 1
    %p140 = por %p138, %p139
    %p141 = scmp.ne.s32.totalorder %s133, %s136
    %p142 = scmp.eq.s32.totalorder %s11, 0
    %p143 = por %p141, %p142
    %p144 = scmp.ne.s32.totalorder %s133, %s136
    %p145 = scmp.eq.s32.totalorder %s16, 1
    %p146 = por %p144, %p145
    %p147 = scmp.ne.s32.totalorder %s136, %s137
    %p148 = scmp.eq.s32.totalorder %s16, 0
    %p149 = por %p147, %p148
    %p150 = scmp.ne.s32.totalorder %s136, %s137
    %p151 = scmp.eq.s32.totalorder %s17, 1
    %p152 = por %p150, %p151
    %p154 = scmp.ne.s32.totalorder %s137, %s153
    %p155 = scmp.eq.s32.totalorder %s17, 0
    %p156 = por %p154, %p155
    %p157 = scmp.le.s32.totalorder 1, %s11
    %p158 = scmp.lt.s32.totalorder %s11, 3
    %p159 = pnand %p157, %p158
    %p160 = pneg %p159
    // Predicated region
    $region9: #{head_forward.2} parent=5 // pred_check
      _
    $region10: #{head_forward.2} parent=5 // pred_check_branch
      %162 = sbr.rel (%p159) target = $region12
    $region11: #{head_forward.2} parent=5 // pred_region
      %s163 = ssub.s32 %s11, 1
      // Predicated region
      $region13: #{head_forward.2} parent=11 // pred_check
        %p164 = pneg %p72
      $region14: #{head_forward.2} parent=11 // pred_check_branch
        %166 = sbr.rel (%p164) target = $region16
      $region15: #{head_forward.2} parent=11 // pred_region
        _
      $region16: #{head_forward.2} parent=11 // pred_fallthru
        _
      // Predicated region
      $region17: #{head_forward.2} parent=11 // pred_check
        %p167 = pneg %p93
      $region18: #{head_forward.2} parent=11 // pred_check_branch
        %169 = sbr.rel (%p167) target = $region20
      $region19: #{head_forward.2} parent=11 // pred_region
        _
      $region20: #{head_forward.2} parent=11 // pred_fallthru
        _
    $region12: #{head_forward.2} parent=5 // pred_fallthru
      _
    %p170 = scmp.lt.s32.totalorder %s11, 2
    // Predicated region
    $region21: #{head_forward.2} parent=5 // pred_check
      %p171 = pneg %p170
    $region22: #{head_forward.2} parent=5 // pred_check_branch
      %173 = sbr.rel (%p171) target = $region24
    $region23: #{head_forward.2} parent=5 // pred_region
      // Predicated region
      $region25: #{head_forward.2} parent=23 // pred_check
        %p174 = pneg %p45
      $region26: #{head_forward.2} parent=23 // pred_check_branch
        %176 = sbr.rel (%p174) target = $region28
      $region27: #{head_forward.2} parent=23 // pred_region
        %p177 = scmp.lt.s32.totalorder %s18, 1
        %s178 = scalar_select %p177, %s18, 1
        %p179 = scmp.lt.s32.totalorder %s19, 0
        %s180 = scalar_select %p179, %s19, 0
        %s181 = sadd.s32 %s180, %s178
        %s182 = smul.addr %s181, 4
        %s183 = scalar_lea.vmem %s0, %s182
      $region28: #{head_forward.2} parent=23 // pred_fallthru
        _
    $region24: #{head_forward.2} parent=5 // pred_fallthru
      _
    %p184 = scmp.le.s32.totalorder 1, %s11
    %p185 = scmp.lt.s32.totalorder %s11, 3
    %p186 = pnand %p184, %p185
    %p187 = pneg %p186
    // Predicated region
    $region29: #{head_forward.2} parent=5 // pred_check
      _
    $region30: #{head_forward.2} parent=5 // pred_check_branch
      %189 = sbr.rel (%p186) target = $region32
    $region31: #{head_forward.2} parent=5 // pred_region
      %s190 = ssub.s32 %s11, 1
      %p191 = scmp.lt.s32.totalorder %s20, 1
      %s192 = scalar_select %p191, %s20, 1
      %p193 = scmp.lt.s32.totalorder %s21, 0
      %s194 = scalar_select %p193, %s21, 0
      %s195 = sadd.s32 %s194, %s192
      %s196 = smul.addr %s195, 4
      %s197 = scalar_lea.vmem %s0, %s196
      %p198 = pneg %p51
      %p199 = pneg %p48
      %p200 = pneg %p72
      %p201 = pneg %p69
      %p202 = pneg %p93
      %p203 = pneg %p90
      %p204 = pneg %p121
      %p205 = pneg %p118
      %p206 = scmp.lt.s32.totalorder %s20, 1
      %s207 = scalar_select %p206, %s20, 1
      %p208 = scmp.lt.s32.totalorder %s21, 0
      %s209 = scalar_select %p208, %s21, 0
      %s210 = sadd.s32 %s209, %s207
      %s211 = smul.addr %s210, 4
      %s212 = scalar_lea.vmem %s3, %s211
      %p213 = pneg %p149
      %p214 = pneg %p146
      %p215 = scmp.lt.s32.totalorder %s20, 1
      %s216 = scalar_select %p215, %s20, 1
      %p217 = scmp.lt.s32.totalorder %s21, 0
      %s218 = scalar_select %p217, %s21, 0
      %s219 = sadd.s32 %s218, %s216
      %s220 = smul.addr %s219, 4
      %s221 = scalar_lea.vmem %s4, %s220
      %p222 = scmp.lt.s32.totalorder %s20, 1
      %s223 = scalar_select %p222, %s20, 1
      %p224 = scmp.lt.s32.totalorder %s21, 0
      %s225 = scalar_select %p224, %s21, 0
      %s226 = sadd.s32 %s225, %s223
      %s227 = smul.addr %s226, 4
      %s228 = scalar_lea.vmem %s0, %s227
      %p229 = scmp.lt.s32.totalorder %s20, 1
      %s230 = scalar_select %p229, %s20, 1
      %p231 = scmp.lt.s32.totalorder %s21, 0
      %s232 = scalar_select %p231, %s21, 0
      %s233 = sadd.s32 %s232, %s230
      %s234 = smul.addr %s233, 4
      %s235 = scalar_lea.vmem %s3, %s234
      %p236 = scmp.lt.s32.totalorder %s20, 1
      %s237 = scalar_select %p236, %s20, 1
      %p238 = scmp.lt.s32.totalorder %s21, 0
      %s239 = scalar_select %p238, %s21, 0
      %s240 = sadd.s32 %s239, %s237
      %s241 = smul.addr %s240, 4
      %s242 = scalar_lea.vmem %s4, %s241
      %v244 = vld [vmem:[%s228] sm:$0xf]
      %v245 = vld [vmem:[%s1] sm:$0xf]
      %v246 = vld [vmem:[%s1 + $0x4] sm:$0xf]
      %v247 = vld [vmem:[%s1 + $0x8] sm:$0xf]
      %v248 = vld [vmem:[%s1 + $0xc] sm:$0xf]
      %v253 = vunpack.c.l.b16 %v245
      %v254 = vunpack.c.l.b16 %v246
      %v255 = vunpack.c.l.b16 %v247
      %v256 = vunpack.c.l.b16 %v248
      %v257 = vpack.c.b16 %v254, %v253
      %v258 = vpack.c.b16 %v256, %v255
      %vm261 = vcmask 261120
      %v263 = vsel %vm261, %v244, 0
      %265 = vmatprep.subr.bf16.mxu0 0
      %266 = vmatpush1.bf16.msra.mxu0 %v257
      %267 = vmatprep.subr.bf16.mxu0 0
      %268 = vmatpush1.bf16.msra.mxu0 %v258
      %269 = vmatprep.subr.bf16.mxu0 0
      %270 = vmatpush1.bf16.msra.mxu0 0
      %271 = vmatprep.subr.bf16.mxu0 0
      %272 = vmatpush1.bf16.msra.mxu0 0
      %273 = vmatprep.subr.bf16.mxu0 0
      %274 = vmatpush1.bf16.msra.mxu0 0
      %275 = vmatprep.subr.bf16.mxu0 0
      %276 = vmatpush1.bf16.msra.mxu0 0
      %277 = vmatprep.subr.bf16.mxu0 0
      %278 = vmatpush1.bf16.msra.mxu0 0
      %279 = vmatprep.subr.bf16.mxu0 0
      %280 = vmatpush1.bf16.msra.mxu0 0
      %281 = vmatprep.subr.bf16.mxu0 0
      %282 = vmatpush1.bf16.msra.mxu0 0
      %283 = vmatprep.subr.bf16.mxu0 0
      %284 = vmatpush1.bf16.msra.mxu0 0
      %285 = vmatprep.subr.bf16.mxu0 0
      %286 = vmatpush1.bf16.msra.mxu0 0
      %287 = vmatprep.subr.bf16.mxu0 0
      %288 = vmatpush1.bf16.msra.mxu0 0
      %289 = vmatprep.subr.bf16.mxu0 0
      %290 = vmatpush1.bf16.msra.mxu0 0
      %291 = vmatprep.subr.bf16.mxu0 0
      %292 = vmatpush1.bf16.msra.mxu0 0
      %293 = vmatprep.subr.bf16.mxu0 0
      %294 = vmatpush1.bf16.msra.mxu0 0
      %295 = vmatprep.subr.bf16.mxu0 0
      %296 = vmatpush1.bf16.msra.mxu0 0
      %297 = vmatprep.mubr.bf16.mxu0 0
      %298 = vmatmul.mubr.bf16.gmra.mrb[0].mxu0 %v263
      %v299 = vpop.f32.mrb[0].mxu0
      %v300 = vadd.f32 0.0, %v299
      %v301 = vpop.f32.mrb[0].mxu0
      %v302 = vpop.f32.mrb[0].mxu0
      %v303 = vpop.f32.mrb[0].mxu0
      %304 = vdwg.mxu0
      %v305 = vld [vmem:[%s2] sm:$0xf]
      %v306 = vld [vmem:[%s2 + $0x4] sm:$0xf]
      %v307 = vld [vmem:[%s2 + $0x8] sm:$0xf]
      %v308 = vld [vmem:[%s2 + $0xc] sm:$0xf]
      %v313 = vunpack.c.l.b16 %v305
      %v314 = vunpack.c.l.b16 %v306
      %v315 = vunpack.c.l.b16 %v307
      %v316 = vunpack.c.l.b16 %v308
      %v317 = vpack.c.b16 %v314, %v313
      %v318 = vpack.c.b16 %v316, %v315
      %321 = vmatprep.subr.bf16.mxu0 0
      %322 = vmatpush1.bf16.msra.mxu0 %v317
      %323 = vmatprep.subr.bf16.mxu0 0
      %324 = vmatpush1.bf16.msra.mxu0 %v318
      %325 = vmatprep.subr.bf16.mxu0 0
      %326 = vmatpush1.bf16.msra.mxu0 0
      %327 = vmatprep.subr.bf16.mxu0 0
      %328 = vmatpush1.bf16.msra.mxu0 0
      %329 = vmatprep.subr.bf16.mxu0 0
      %330 = vmatpush1.bf16.msra.mxu0 0
      %331 = vmatprep.subr.bf16.mxu0 0
      %332 = vmatpush1.bf16.msra.mxu0 0
      %333 = vmatprep.subr.bf16.mxu0 0
      %334 = vmatpush1.bf16.msra.mxu0 0
      %335 = vmatprep.subr.bf16.mxu0 0
      %336 = vmatpush1.bf16.msra.mxu0 0
      %337 = vmatprep.subr.bf16.mxu0 0
      %338 = vmatpush1.bf16.msra.mxu0 0
      %339 = vmatprep.subr.bf16.mxu0 0
      %340 = vmatpush1.bf16.msra.mxu0 0
      %341 = vmatprep.subr.bf16.mxu0 0
      %342 = vmatpush1.bf16.msra.mxu0 0
      %343 = vmatprep.subr.bf16.mxu0 0
      %344 = vmatpush1.bf16.msra.mxu0 0
      %345 = vmatprep.subr.bf16.mxu0 0
      %346 = vmatpush1.bf16.msra.mxu0 0
      %347 = vmatprep.subr.bf16.mxu0 0
      %348 = vmatpush1.bf16.msra.mxu0 0
      %349 = vmatprep.subr.bf16.mxu0 0
      %350 = vmatpush1.bf16.msra.mxu0 0
      %351 = vmatprep.subr.bf16.mxu0 0
      %352 = vmatpush1.bf16.msra.mxu0 0
      %353 = vmatprep.mubr.bf16.mxu0 0
      %354 = vmatmul.mubr.bf16.gmra.mrb[0].mxu0 %v263
      %v355 = vpop.f32.mrb[0].mxu0
      %v356 = vadd.f32 0.0, %v355
      %v357 = vpop.f32.mrb[0].mxu0
      %v358 = vpop.f32.mrb[0].mxu0
      %v359 = vpop.f32.mrb[0].mxu0
      %360 = vdwg.mxu0
      %v361 = vmul.f32 %v300, 0.25
      %v362 = vpack.c.bf16 %v361, %v361
      %vm363 = vcmask 125952
      %364 = vst.msk [vmem:[%s235] sm:$0xf] %vm363, %v362
      %v365 = vpack.c.bf16 %v356, %v356
      %366 = vst.msk [vmem:[%s242] sm:$0xf] %vm363, %v365
      %p367 = scmp.lt.s32.totalorder %s20, 1
      %s368 = scalar_select %p367, %s20, 1
      %p369 = scmp.lt.s32.totalorder %s21, 0
      %s370 = scalar_select %p369, %s21, 0
      %s371 = sadd.s32 %s370, %s368
      %s372 = smul.addr %s371, 4
      %s373 = scalar_lea.vmem %s3, %s372
      %p374 = scmp.lt.s32.totalorder %s20, 1
      %s375 = scalar_select %p374, %s20, 1
      %p376 = scmp.lt.s32.totalorder %s21, 0
      %s377 = scalar_select %p376, %s21, 0
      %s378 = sadd.s32 %s377, %s375
      %s379 = smul.addr %s378, 4
      %s380 = scalar_lea.vmem %s4, %s379
      // Predicated region
      $region33: #{head_forward.2} parent=31 // pred_check
        %p381 = pneg %p118
      $region34: #{head_forward.2} parent=31 // pred_check_branch
        %383 = sbr.rel (%p381) target = $region36
      $region35: #{head_forward.2} parent=31 // pred_region
        _
      $region36: #{head_forward.2} parent=31 // pred_fallthru
        _
      // Predicated region
      $region37: #{head_forward.2} parent=31 // pred_check
        %p384 = pneg %p146
      $region38: #{head_forward.2} parent=31 // pred_check_branch
        %386 = sbr.rel (%p384) target = $region40
      $region39: #{head_forward.2} parent=31 // pred_region
        _
      $region40: #{head_forward.2} parent=31 // pred_fallthru
        _
    $region32: #{head_forward.2} parent=5 // pred_fallthru
      _
    %p387 = scmp.le.s32.totalorder 2, %s11
    // Predicated region
    $region41: #{head_forward.2} parent=5 // pred_check
      %p388 = pneg %p387
    $region42: #{head_forward.2} parent=5 // pred_check_branch
      %390 = sbr.rel (%p388) target = $region44
    $region43: #{head_forward.2} parent=5 // pred_region
      %s391 = ssub.s32 %s11, 2
      // Predicated region
      $region45: #{head_forward.2} parent=43 // pred_check
        %p392 = pneg %p124
      $region46: #{head_forward.2} parent=43 // pred_check_branch
        %394 = sbr.rel (%p392) target = $region48
      $region47: #{head_forward.2} parent=43 // pred_region
        %p395 = scmp.lt.s32.totalorder %s22, 1
        %s396 = scalar_select %p395, %s22, 1
        %p397 = scmp.lt.s32.totalorder %s23, 0
        %s398 = scalar_select %p397, %s23, 0
        %s399 = sadd.s32 %s398, %s396
        %s400 = smul.addr %s399, 4
        %s401 = scalar_lea.vmem %s3, %s400
      $region48: #{head_forward.2} parent=43 // pred_fallthru
        _
      // Predicated region
      $region49: #{head_forward.2} parent=43 // pred_check
        %p402 = pneg %p152
      $region50: #{head_forward.2} parent=43 // pred_check_branch
        %404 = sbr.rel (%p402) target = $region52
      $region51: #{head_forward.2} parent=43 // pred_region
        %p405 = scmp.lt.s32.totalorder %s22, 1
        %s406 = scalar_select %p405, %s22, 1
        %p407 = scmp.lt.s32.totalorder %s23, 0
        %s408 = scalar_select %p407, %s23, 0
        %s409 = sadd.s32 %s408, %s406
        %s410 = smul.addr %s409, 4
        %s411 = scalar_lea.vmem %s4, %s410
      $region52: #{head_forward.2} parent=43 // pred_fallthru
        _
    $region44: #{head_forward.2} parent=5 // pred_fallthru
      _
  $region6: #{head_forward.2} parent=0 // loop_footer
    %s15 = sadd.s32 1, %s11
  $region7: #{head_forward.2} parent=0 // loop_footer_branch
    %10 = sbr.rel target = $region3
  $region8: #{head_forward.2} parent=0 // loop_exit
    _

// kernel: head_forward.3
$region0: #{head_forward.3}
  #allocation0 [shape = 'u32[]', space=smem, size = 0x4, offset = 0x4, fixed_abs, tag = 'smem constant byte address 0x4 - core index']
  #allocation1 [shape = 'u32[144,128]{1,0:T(1,128)}', space=vmem, size = 0x12000, scoped, tag = 'internal scratch']
  #allocation2 [shape = 'f32[8,1]{1,0:T(8,128)}', space=vmem, size = 0x1000, scoped, tag = 'scratch operand']
  #allocation3 [shape = 'f32[8,1]{1,0:T(8,128)}', space=vmem, size = 0x1000, scoped, tag = 'scratch operand']
  #allocation4 [shape = 'f32[8,16]{1,0:T(8,128)}', space=vmem, size = 0x1000, scoped, tag = 'scratch operand']
  %s0 = inlined_call_operand.vmem [shape: bf16[2,8,16], index: 0, kind: input, shape index: {}]
  %s1 = inlined_call_operand.vmem [shape: bf16[2,8,16], index: 1, kind: input, shape index: {}]
  %s2 = inlined_call_operand.hbm [shape: f32[2,8,16], index: 2, kind: output, shape index: {}]
  %s3 = sld [smem:[#allocation0]]
  $region53: #{head_forward.3} parent=0
    _
  %s5 = ssub.s32 1, %s3
  %s6 = scalar_select 0, %s5, %s3
  $region1: #{head_forward.3} parent=0
    #allocation5 [shape = 'u8[8192]{0}', space=vmem, size = 0x2000, scoped, tag = 'output window, operand 0']
    #allocation6 [shape = 's32[2]{0}', space=sflag, size = 0x8, scoped, tag = 'scoped memory for head_forward.3']
    %7 = vsyncpa [#allocation6], 0
    %s8 = scalar_lea.sflag [#allocation6], 1
    %9 = vsyncpa %s8, 0
    loop: start=0, step=1, limit=4
    $region2: #{head_forward.3} parent=1 // loop_pre_header
      _
    $region3: #{head_forward.3} parent=1 // loop_header
      %s11 = sphi 0, %s15
      %p12 = scmp.ge.s32.totalorder %s11, 4
      %s18 = sphi 0, %s37
      %s19 = sphi 0, %s33
      %s20 = sphi 0, %s29
      %s21 = sphi 0, %s18
      %s22 = sphi 0, %s19
      %s23 = sphi 0, %s20
      %s24 = sphi 0, %s21
      %s25 = sphi 0, %s22
      %s26 = sphi 0, %s23
      %s42 = sphi 0, %s44
      %s45 = sphi 0, %s42
      %s46 = sphi 0, %s45
      %s62 = sphi 0, %s46
      %s74 = sphi 0, %s76
      %s77 = sphi 0, %s74
      %s78 = sphi 0, %s77
      %s94 = sphi 0, %s78
      %s102 = sphi 0, %s104
      %s105 = sphi 0, %s102
      %s106 = sphi 0, %s105
      %s122 = sphi 0, %s106
    $region4: #{head_forward.3} parent=1 // loop_header_branch
      %14 = sbr.rel (%p12) target = $region8
    $region5: #{head_forward.3} parent=1 // loop_body
      %s16 = ssub.s32 %s11, 1
      %s17 = ssub.s32 %s11, 2
      %s27 = sadd.s32 1, %s20
      %p28 = scmp.ge.s32.totalorder %s27, 1
      %s29 = scalar_select %p28, 0, %s27
      %s30 = sadd.s32 1, %s19
      %s31 = scalar_select %p28, %s30, %s19
      %p32 = scmp.ge.s32.totalorder %s31, 1
      %s33 = scalar_select %p32, 0, %s31
      %s34 = sadd.s32 1, %s18
      %s35 = scalar_select %p32, %s34, %s18
      %p36 = scmp.ge.s32.totalorder %s35, 2
      %s37 = scalar_select %p36, 0, %s35
      %s38 = ssub.s32 %s18, %s37
      %s39 = ssub.s32 %s19, %s33
      %s40 = sor.u32 %s38, %s39
      %p41 = scmp.eq.s32.totalorder %s40, 0
      %s43 = sadd.s32 %s42, 1
      %s44 = scalar_select %p41, %s42, %s43
      %p47 = pneg %p41
      %p48 = scmp.eq.s32.totalorder %s11, 1
      %p49 = por %p47, %p48
      %p50 = scmp.ne.s32.totalorder %s42, %s45
      %p51 = scmp.eq.s32.totalorder %s11, 0
      %p52 = por %p50, %p51
      %p53 = scmp.ne.s32.totalorder %s42, %s45
      %p54 = scmp.eq.s32.totalorder %s16, 1
      %p55 = por %p53, %p54
      %p56 = scmp.ne.s32.totalorder %s45, %s46
      %p57 = scmp.eq.s32.totalorder %s16, 0
      %p58 = por %p56, %p57
      %p59 = scmp.ne.s32.totalorder %s45, %s46
      %p60 = scmp.eq.s32.totalorder %s17, 1
      %p61 = por %p59, %p60
      %p63 = scmp.ne.s32.totalorder %s46, %s62
      %p64 = scmp.eq.s32.totalorder %s17, 0
      %p65 = por %p63, %p64
      %p66 = scmp.lt.s32.totalorder %s20, %s19
      %s67 = scalar_select %p66, %s20, %s19
      %p68 = scmp.lt.s32.totalorder %s29, %s33
      %s69 = scalar_select %p68, %s29, %s33
      %s70 = ssub.s32 %s18, %s37
      %s71 = ssub.s32 %s67, %s69
      %s72 = sor.u32 %s70, %s71
      %p73 = scmp.eq.s32.totalorder %s72, 0
      %s75 = sadd.s32 %s74, 1
      %s76 = scalar_select %p73, %s74, %s75
      %p79 = pneg %p73
      %p80 = scmp.eq.s32.totalorder %s11, 1
      %p81 = por %p79, %p80
      %p82 = scmp.ne.s32.totalorder %s74, %s77
      %p83 = scmp.eq.s32.totalorder %s11, 0
      %p84 = por %p82, %p83
      %p85 = scmp.ne.s32.totalorder %s74, %s77
      %p86 = scmp.eq.s32.totalorder %s16, 1
      %p87 = por %p85, %p86
      %p88 = scmp.ne.s32.totalorder %s77, %s78
      %p89 = scmp.eq.s32.totalorder %s16, 0
      %p90 = por %p88, %p89
      %p91 = scmp.ne.s32.totalorder %s77, %s78
      %p92 = scmp.eq.s32.totalorder %s17, 1
      %p93 = por %p91, %p92
      %p95 = scmp.ne.s32.totalorder %s78, %s94
      %p96 = scmp.eq.s32.totalorder %s17, 0
      %p97 = por %p95, %p96
      %s98 = ssub.s32 %s18, %s37
      %s99 = ssub.s32 %s19, %s33
      %s100 = sor.u32 %s98, %s99
      %p101 = scmp.eq.s32.totalorder %s100, 0
      %s103 = sadd.s32 %s102, 1
      %s104 = scalar_select %p101, %s102, %s103
      %p107 = pneg %p101
      %p108 = scmp.eq.s32.totalorder %s11, 1
      %p109 = por %p107, %p108
      %p110 = scmp.ne.s32.totalorder %s102, %s105
      %p111 = scmp.eq.s32.totalorder %s11, 0
      %p112 = por %p110, %p111
      %p113 = scmp.ne.s32.totalorder %s102, %s105
      %p114 = scmp.eq.s32.totalorder %s16, 1
      %p115 = por %p113, %p114
      %p116 = scmp.ne.s32.totalorder %s105, %s106
      %p117 = scmp.eq.s32.totalorder %s16, 0
      %p118 = por %p116, %p117
      %p119 = scmp.ne.s32.totalorder %s105, %s106
      %p120 = scmp.eq.s32.totalorder %s17, 1
      %p121 = por %p119, %p120
      %p123 = scmp.ne.s32.totalorder %s106, %s122
      %p124 = scmp.eq.s32.totalorder %s17, 0
      %p125 = por %p123, %p124
      %p126 = scmp.le.s32.totalorder 1, %s11
      %p127 = scmp.lt.s32.totalorder %s11, 3
      %p128 = pnand %p126, %p127
      %p129 = pneg %p128
      // Predicated region
      $region9: #{head_forward.3} parent=5 // pred_check
        _
      $region10: #{head_forward.3} parent=5 // pred_check_branch
        %131 = sbr.rel (%p128) target = $region12
      $region11: #{head_forward.3} parent=5 // pred_region
        %s132 = ssub.s32 %s11, 1
      $region12: #{head_forward.3} parent=5 // pred_fallthru
        _
      %p133 = scmp.lt.s32.totalorder %s11, 2
      // Predicated region
      $region13: #{head_forward.3} parent=5 // pred_check
        %p134 = pneg %p133
      $region14: #{head_forward.3} parent=5 // pred_check_branch
        %136 = sbr.rel (%p134) target = $region16
      $region15: #{head_forward.3} parent=5 // pred_region
        // Predicated region
        $region17: #{head_forward.3} parent=15 // pred_check
          %p137 = pneg %p52
        $region18: #{head_forward.3} parent=15 // pred_check_branch
          %139 = sbr.rel (%p137) target = $region20
        $region19: #{head_forward.3} parent=15 // pred_region
          %p140 = scmp.lt.s32.totalorder %s18, 1
          %s141 = scalar_select %p140, %s18, 1
          %p142 = scmp.lt.s32.totalorder %s19, 0
          %s143 = scalar_select %p142, %s19, 0
          %s144 = sadd.s32 %s143, %s141
          %s145 = smul.addr %s144, 4
          %s146 = scalar_lea.vmem %s0, %s145
        $region20: #{head_forward.3} parent=15 // pred_fallthru
          _
        // Predicated region
        $region21: #{head_forward.3} parent=15 // pred_check
          %p147 = pneg %p84
        $region22: #{head_forward.3} parent=15 // pred_check_branch
          %149 = sbr.rel (%p147) target = $region24
        $region23: #{head_forward.3} parent=15 // pred_region
          %p150 = scmp.lt.s32.totalorder %s20, %s19
          %s151 = scalar_select %p150, %s20, %s19
          %p152 = scmp.lt.s32.totalorder %s18, 1
          %s153 = scalar_select %p152, %s18, 1
          %p154 = scmp.lt.s32.totalorder %s151, 0
          %s155 = scalar_select %p154, %s151, 0
          %s156 = sadd.s32 %s155, %s153
          %s157 = smul.addr %s156, 4
          %s158 = scalar_lea.vmem %s1, %s157
          %p159 = scmp.lt.s32.totalorder %s20, %s19
          %s160 = scalar_select %p159, %s20, %s19
        $region24: #{head_forward.3} parent=15 // pred_fallthru
          _
      $region16: #{head_forward.3} parent=5 // pred_fallthru
        _
      %p161 = scmp.le.s32.totalorder 1, %s11
      %p162 = scmp.lt.s32.totalorder %s11, 3
      %p163 = pnand %p161, %p162
      %p164 = pneg %p163
      // Predicated region
      $region25: #{head_forward.3} parent=5 // pred_check
        _
      $region26: #{head_forward.3} parent=5 // pred_check_branch
        %166 = sbr.rel (%p163) target = $region28
      $region27: #{head_forward.3} parent=5 // pred_region
        %s167 = ssub.s32 %s11, 1
        %p168 = scmp.lt.s32.totalorder %s21, 1
        %s169 = scalar_select %p168, %s21, 1
        %p170 = scmp.lt.s32.totalorder %s22, 0
        %s171 = scalar_select %p170, %s22, 0
        %s172 = sadd.s32 %s171, %s169
        %s173 = smul.addr %s172, 4
        %s174 = scalar_lea.vmem %s0, %s173
        %p175 = pneg %p58
        %p176 = pneg %p55
        %p177 = scmp.lt.s32.totalorder %s23, %s22
        %s178 = scalar_select %p177, %s23, %s22
        %p179 = scmp.lt.s32.totalorder %s21, 1
        %s180 = scalar_select %p179, %s21, 1
        %p181 = scmp.lt.s32.totalorder %s178, 0
        %s182 = scalar_select %p181, %s178, 0
        %s183 = sadd.s32 %s182, %s180
        %s184 = smul.addr %s183, 4
        %s185 = scalar_lea.vmem %s1, %s184
        %p186 = pneg %p90
        %p187 = pneg %p87
        %p188 = pneg %p118
        %p189 = pneg %p115
        %s190 = sand.u32 %s105, 1
        %s191 = scalar_lea.sflag [#allocation6], %s190
        %s192 = sand.u32 %s105, 1
        %s193 = smul.addr %s192, 8
        %s194 = scalar_lea.vmem [#allocation5], %s193
        %p195 = scmp.lt.s32.totalorder %s21, 1
        %s196 = scalar_select %p195, %s21, 1
        %p197 = scmp.lt.s32.totalorder %s22, 0
        %s198 = scalar_select %p197, %s22, 0
        %s199 = sadd.s32 %s198, %s196
        %s200 = smul.addr %s199, 4
        %s201 = scalar_lea.vmem %s0, %s200
        %p202 = scmp.lt.s32.totalorder %s23, %s22
        %s203 = scalar_select %p202, %s23, %s22
        %p204 = scmp.lt.s32.totalorder %s21, 1
        %s205 = scalar_select %p204, %s21, 1
        %p206 = scmp.lt.s32.totalorder %s203, 0
        %s207 = scalar_select %p206, %s203, 0
        %s208 = sadd.s32 %s207, %s205
        %s209 = smul.addr %s208, 4
        %s210 = scalar_lea.vmem %s1, %s209
        %p211 = scmp.lt.s32.totalorder %s23, %s22
        %s212 = scalar_select %p211, %s23, %s22
        %p214 = scmp.eq.s32.totalorder %s23, 0
        // Predicated region
        $region29: #{head_forward.3} parent=27 // pred_check
          %p215 = pneg %p214
        $region30: #{head_forward.3} parent=27 // pred_check_branch
          %217 = sbr.rel (%p215) target = $region32
        $region31: #{head_forward.3} parent=27 // pred_region
          %vm218 = vcmask 7168
          %219 = vst.msk [vmem:[#allocation2] sm:$0xff] %vm218, -1e+30
          %220 = vst.msk [vmem:[#allocation3] sm:$0xff] %vm218, 0.0
          %vm221 = vcmask 130048
          %222 = vst.msk [vmem:[#allocation4] sm:$0xff] %vm221, 0.0
        $region32: #{head_forward.3} parent=27 // pred_fallthru
          _
        %p223 = scmp.lt.s32.totalorder %s23, %s22
        // Predicated region
        $region33: #{head_forward.3} parent=27 // pred_check
          %p224 = pneg %p223
        $region34: #{head_forward.3} parent=27 // pred_check_branch
          %226 = sbr.rel (%p224) target = $region36
        $region35: #{head_forward.3} parent=27 // pred_region
          %v227 = vld [vmem:[%s201] sm:$0xf]
          %v228 = vld [vmem:[%s210] sm:$0xf]
          %vm229 = vcmask 130048
          %v231 = vsel %vm229, %v227, 0
          %v234 = vsel %vm229, %v228, 0
          %236 = vmatprep.subr.bf16.mxu0 0
          %237 = vmatpush1.bf16.xpose.msra.mxu0 %v234
          %238 = vmatprep.subr.bf16.mxu0 0
          %239 = vmatpush1.bf16.xpose.msra.mxu0 0
          %240 = vmatprep.subr.bf16.mxu0 0
          %241 = vmatpush1.bf16.xpose.msra.mxu0 0
          %242 = vmatprep.subr.bf16.mxu0 0
          %243 = vmatpush1.bf16.xpose.msra.mxu0 0
          %244 = vmatprep.subr.bf16.mxu0 0
          %245 = vmatpush1.bf16.xpose.msra.mxu0 0
          %246 = vmatprep.subr.bf16.mxu0 0
          %247 = vmatpush1.bf16.xpose.msra.mxu0 0
          %248 = vmatprep.subr.bf16.mxu0 0
          %249 = vmatpush1.bf16.xpose.msra.mxu0 0
          %250 = vmatprep.subr.bf16.mxu0 0
          %251 = vmatpush1.bf16.xpose.msra.mxu0 0
          %252 = vmatprep.subr.bf16.mxu0 0
          %253 = vmatpush1.bf16.xpose.msra.mxu0 0
          %254 = vmatprep.subr.bf16.mxu0 0
          %255 = vmatpush1.bf16.xpose.msra.mxu0 0
          %256 = vmatprep.subr.bf16.mxu0 0
          %257 = vmatpush1.bf16.xpose.msra.mxu0 0
          %258 = vmatprep.subr.bf16.mxu0 0
          %259 = vmatpush1.bf16.xpose.msra.mxu0 0
          %260 = vmatprep.subr.bf16.mxu0 0
          %261 = vmatpush1.bf16.xpose.msra.mxu0 0
          %262 = vmatprep.subr.bf16.mxu0 0
          %263 = vmatpush1.bf16.xpose.msra.mxu0 0
          %264 = vmatprep.subr.bf16.mxu0 0
          %265 = vmatpush1.bf16.xpose.msra.mxu0 0
          %266 = vmatprep.subr.bf16.mxu0 0
          %267 = vmatpush1.bf16.xpose.msra.mxu0 0
          %268 = vmatprep.mubr.bf16.mxu0 0
          %269 = vmatmul.mubr.bf16.gmra.mrb[0].mxu0 %v231
          %v270 = vpop.f32.mrb[0].mxu0
          %v271 = vadd.f32 0.0, %v270
          %v272 = vpop.f32.mrb[0].mxu0
          %v273 = vpop.f32.mrb[0].mxu0
          %v274 = vpop.f32.mrb[0].mxu0
          %275 = vdwg.mxu0
          %v276 = vld [vmem:[#allocation2] sm:$0xff]
          %vm277 = vcmask 64512
          %v278 = vsel %vm277, %v271, -inf
          %279 = vmax.xlane.f32.xlu0 %v278
          %v280 = vpop.xlane.xlu0 %279
          %v281 = vmax.f32 %v276, %v280
          %v282 = vsub.f32 %v276, %v281
          %v283 = vmul.f32 %v282, 1.442695
          %v284 = vpow.pop %v283
          %286 = vset.pattern.permute.xlu0 0
          %287 = vperm.xlu0 %286, %v281
          %v288 = vpop.permute.xlu0 %287
          %v290 = vsub.f32 %v271, %v288
          %v291 = vmul.f32 %v290, 1.442695
          %v292 = vpow.pop %v291
          %v293 = vld [vmem:[#allocation3] sm:$0xff]
          %v294 = vmul.f32 %v284, %v293
          %v295 = vsel %vm277, %v292, 0.0
          %296 = vadd.xlane.f32.xlu0 %v295
          %v297 = vpop.xlane.xlu0 %296
          %v298 = vadd.f32 %v294, %v297
          %vm299 = vcmask 7168
          %300 = vst.msk [vmem:[#allocation3] sm:$0xff] %vm299, %v298
          %v301 = vld [vmem:[#allocation4] sm:$0xff]
          %303 = vset.pattern.permute.xlu0 0
          %304 = vperm.xlu0 %303, %v284
          %v305 = vpop.permute.xlu0 %304
          %v307 = vmul.f32 %v305, %v301
          %v308 = vpack.c.bf16 %v292, %v292
          %v310 = vsel %vm277, %v308, 0
          %vm312 = vcmask 1043456
          %v313 = vsel %vm312, %v228, 0
          %315 = vmatprep.subr.bf16.mxu0 0
          %316 = vmatpush1.bf16.msra.mxu0 %v313
          %317 = vmatprep.subr.bf16.mxu0 0
          %318 = vmatpush1.bf16.msra.mxu0 0
          %319 = vmatprep.subr.bf16.mxu0 0
          %320 = vmatpush1.bf16.msra.mxu0 0
          %321 = vmatprep.subr.bf16.mxu0 0
          %322 = vmatpush1.bf16.msra.mxu0 0
          %323 = vmatprep.subr.bf16.mxu0 0
          %324 = vmatpush1.bf16.msra.mxu0 0
          %325 = vmatprep.subr.bf16.mxu0 0
          %326 = vmatpush1.bf16.msra.mxu0 0
          %327 = vmatprep.subr.bf16.mxu0 0
          %328 = vmatpush1.bf16.msra.mxu0 0
          %329 = vmatprep.subr.bf16.mxu0 0
          %330 = vmatpush1.bf16.msra.mxu0 0
          %331 = vmatprep.subr.bf16.mxu0 0
          %332 = vmatpush1.bf16.msra.mxu0 0
          %333 = vmatprep.subr.bf16.mxu0 0
          %334 = vmatpush1.bf16.msra.mxu0 0
          %335 = vmatprep.subr.bf16.mxu0 0
          %336 = vmatpush1.bf16.msra.mxu0 0
          %337 = vmatprep.subr.bf16.mxu0 0
          %338 = vmatpush1.bf16.msra.mxu0 0
          %339 = vmatprep.subr.bf16.mxu0 0
          %340 = vmatpush1.bf16.msra.mxu0 0
          %341 = vmatprep.subr.bf16.mxu0 0
          %342 = vmatpush1.bf16.msra.mxu0 0
          %343 = vmatprep.subr.bf16.mxu0 0
          %344 = vmatpush1.bf16.msra.mxu0 0
          %345 = vmatprep.subr.bf16.mxu0 0
          %346 = vmatpush1.bf16.msra.mxu0 0
          %347 = vmatprep.mubr.bf16.mxu0 0
          %348 = vmatmul.mubr.bf16.gmra.mrb[0].mxu0 %v310
          %v349 = vpop.f32.mrb[0].mxu0
          %v350 = vadd.f32 0.0, %v349
          %v351 = vpop.f32.mrb[0].mxu0
          %v352 = vpop.f32.mrb[0].mxu0
          %v353 = vpop.f32.mrb[0].mxu0
          %354 = vdwg.mxu0
          %v355 = vadd.f32 %v307, %v350
          %356 = vst.msk [vmem:[#allocation4] sm:$0xff] %vm229, %v355
          %357 = vst.msk [vmem:[#allocation2] sm:$0xff] %vm299, %v281
        $region36: #{head_forward.3} parent=27 // pred_fallthru
          _
        %p358 = scmp.eq.s32.totalorder %s23, %s22
        // Predicated region
        $region37: #{head_forward.3} parent=27 // pred_check
          %p359 = pneg %p358
        $region38: #{head_forward.3} parent=27 // pred_check_branch
          %361 = sbr.rel (%p359) target = $region40
        $region39: #{head_forward.3} parent=27 // pred_region
          %v362 = vld [vmem:[%s201] sm:$0xf]
          %v363 = vld [vmem:[%s210] sm:$0xf]
          %vm364 = vcmask 130048
          %v366 = vsel %vm364, %v362, 0
          %v369 = vsel %vm364, %v363, 0
          %371 = vmatprep.subr.bf16.mxu0 0
          %372 = vmatpush1.bf16.xpose.msra.mxu0 %v369
          %373 = vmatprep.subr.bf16.mxu0 0
          %374 = vmatpush1.bf16.xpose.msra.mxu0 0
          %375 = vmatprep.subr.bf16.mxu0 0
          %376 = vmatpush1.bf16.xpose.msra.mxu0 0
          %377 = vmatprep.subr.bf16.mxu0 0
          %378 = vmatpush1.bf16.xpose.msra.mxu0 0
          %379 = vmatprep.subr.bf16.mxu0 0
          %380 = vmatpush1.bf16.xpose.msra.mxu0 0
          %381 = vmatprep.subr.bf16.mxu0 0
          %382 = vmatpush1.bf16.xpose.msra.mxu0 0
          %383 = vmatprep.subr.bf16.mxu0 0
          %384 = vmatpush1.bf16.xpose.msra.mxu0 0
          %385 = vmatprep.subr.bf16.mxu0 0
          %386 = vmatpush1.bf16.xpose.msra.mxu0 0
          %387 = vmatprep.subr.bf16.mxu0 0
          %388 = vmatpush1.bf16.xpose.msra.mxu0 0
          %389 = vmatprep.subr.bf16.mxu0 0
          %390 = vmatpush1.bf16.xpose.msra.mxu0 0
          %391 = vmatprep.subr.bf16.mxu0 0
          %392 = vmatpush1.bf16.xpose.msra.mxu0 0
          %393 = vmatprep.subr.bf16.mxu0 0
          %394 = vmatpush1.bf16.xpose.msra.mxu0 0
          %395 = vmatprep.subr.bf16.mxu0 0
          %396 = vmatpush1.bf16.xpose.msra.mxu0 0
          %397 = vmatprep.subr.bf16.mxu0 0
          %398 = vmatpush1.bf16.xpose.msra.mxu0 0
          %399 = vmatprep.subr.bf16.mxu0 0
          %400 = vmatpush1.bf16.xpose.msra.mxu0 0
          %401 = vmatprep.subr.bf16.mxu0 0
          %402 = vmatpush1.bf16.xpose.msra.mxu0 0
          %403 = vmatprep.mubr.bf16.mxu0 0
          %404 = vmatmul.mubr.bf16.gmra.mrb[0].mxu0 %v366
          %v405 = vpop.f32.mrb[0].mxu0
          %v406 = vadd.f32 0.0, %v405
          %v407 = vpop.f32.mrb[0].mxu0
          %v408 = vpop.f32.mrb[0].mxu0
          %v409 = vpop.f32.mrb[0].mxu0
          %410 = vdwg.mxu0
          %v411 = vlaneseq
          %v412 = vshrl.u32 %v411, 7
          %v413 = vlaneseq
          %v414 = vand.u32 %v413, 127
          %vm415 = vcmp.le.s32.totalorder %v414, %v412
          %v416 = vsel %vm415, %v406, -1e+30
          %v417 = vld [vmem:[#allocation2] sm:$0xff]
          %vm418 = vcmask 64512
          %v419 = vsel %vm418, %v416, -inf
          %420 = vmax.xlane.f32.xlu0 %v419
          %v421 = vpop.xlane.xlu0 %420
          %v422 = vmax.f32 %v417, %v421
          %v423 = vsub.f32 %v417, %v422
          %v424 = vmul.f32 %v423, 1.442695
          %v425 = vpow.pop %v424
          %427 = vset.pattern.permute.xlu0 0
          %428 = vperm.xlu0 %427, %v422
          %v429 = vpop.permute.xlu0 %428
          %v431 = vsub.f32 %v416, %v429
          %v432 = vmul.f32 %v431, 1.442695
          %v433 = vpow.pop %v432
          %v434 = vld [vmem:[#allocation3] sm:$0xff]
          %v435 = vmul.f32 %v425, %v434
          %v436 = vsel %vm418, %v433, 0.0
          %437 = vadd.xlane.f32.xlu0 %v436
          %v438 = vpop.xlane.xlu0 %437
          %v439 = vadd.f32 %v435, %v438
          %vm440 = vcmask 7168
          %441 = vst.msk [vmem:[#allocation3] sm:$0xff] %vm440, %v439
          %v442 = vld [vmem:[#allocation4] sm:$0xff]
          %444 = vset.pattern.permute.xlu0 0
          %445 = vperm.xlu0 %444, %v425
          %v446 = vpop.permute.xlu0 %445
          %v448 = vmul.f32 %v446, %v442
          %v449 = vpack.c.bf16 %v433, %v433
          %v451 = vsel %vm418, %v449, 0
          %vm453 = vcmask 1043456
          %v454 = vsel %vm453, %v363, 0
          %456 = vmatprep.subr.bf16.mxu0 0
          %457 = vmatpush1.bf16.msra.mxu0 %v454
          %458 = vmatprep.subr.bf16.mxu0 0
          %459 = vmatpush1.bf16.msra.mxu0 0
          %460 = vmatprep.subr.bf16.mxu0 0
          %461 = vmatpush1.bf16.msra.mxu0 0
          %462 = vmatprep.subr.bf16.mxu0 0
          %463 = vmatpush1.bf16.msra.mxu0 0
          %464 = vmatprep.subr.bf16.mxu0 0
          %465 = vmatpush1.bf16.msra.mxu0 0
          %466 = vmatprep.subr.bf16.mxu0 0
          %467 = vmatpush1.bf16.msra.mxu0 0
          %468 = vmatprep.subr.bf16.mxu0 0
          %469 = vmatpush1.bf16.msra.mxu0 0
          %470 = vmatprep.subr.bf16.mxu0 0
          %471 = vmatpush1.bf16.msra.mxu0 0
          %472 = vmatprep.subr.bf16.mxu0 0
          %473 = vmatpush1.bf16.msra.mxu0 0
          %474 = vmatprep.subr.bf16.mxu0 0
          %475 = vmatpush1.bf16.msra.mxu0 0
          %476 = vmatprep.subr.bf16.mxu0 0
          %477 = vmatpush1.bf16.msra.mxu0 0
          %478 = vmatprep.subr.bf16.mxu0 0
          %479 = vmatpush1.bf16.msra.mxu0 0
          %480 = vmatprep.subr.bf16.mxu0 0
          %481 = vmatpush1.bf16.msra.mxu0 0
          %482 = vmatprep.subr.bf16.mxu0 0
          %483 = vmatpush1.bf16.msra.mxu0 0
          %484 = vmatprep.subr.bf16.mxu0 0
          %485 = vmatpush1.bf16.msra.mxu0 0
          %486 = vmatprep.subr.bf16.mxu0 0
          %487 = vmatpush1.bf16.msra.mxu0 0
          %488 = vmatprep.mubr.bf16.mxu0 0
          %489 = vmatmul.mubr.bf16.gmra.mrb[0].mxu0 %v451
          %v490 = vpop.f32.mrb[0].mxu0
          %v491 = vadd.f32 0.0, %v490
          %v492 = vpop.f32.mrb[0].mxu0
          %v493 = vpop.f32.mrb[0].mxu0
          %v494 = vpop.f32.mrb[0].mxu0
          %495 = vdwg.mxu0
          %v496 = vadd.f32 %v448, %v491
          %497 = vst.msk [vmem:[#allocation4] sm:$0xff] %vm364, %v496
          %498 = vst.msk [vmem:[#allocation2] sm:$0xff] %vm440, %v422
          %v499 = vld [vmem:[#allocation3] sm:$0xff]
          %v500 = vrcp.pop %v499
          %v501 = vld [vmem:[#allocation4] sm:$0xff]
          %503 = vset.pattern.permute.xlu0 0
          %504 = vperm.xlu0 %503, %v500
          %v505 = vpop.permute.xlu0 %504
          %v507 = vmul.f32 %v501, %v505
          %508 = vst.msk [vmem:[%s194] sm:$0xff] %vm364, %v507
        $region40: #{head_forward.3} parent=27 // pred_fallthru
          _
        %s509 = sand.u32 %s105, 1
        %s510 = scalar_lea.sflag [#allocation6], %s509
        %s511 = sand.u32 %s105, 1
        %s512 = smul.addr %s511, 8
        %s513 = scalar_lea.vmem [#allocation5], %s512
        // Predicated region
        $region41: #{head_forward.3} parent=27 // pred_check
          %p514 = pneg %p115
        $region42: #{head_forward.3} parent=27 // pred_check_branch
          %516 = sbr.rel (%p514) target = $region44
        $region43: #{head_forward.3} parent=27 // pred_region
          %s518 = ssub.s32 128, 128
          %519 = vsyncadd %s510, %s518
          %s520 = sadd.s32 %s22, %s21
          %s521 = smul.addr %s520, 128
          %s522 = scalar_lea.hbm %s2, %s521
          %s524 = sshll.u32 %s513, 4
          %s525 = int_to_ptr.vmem [resolvable:$true] %s524
          %527 = dma.vmem_to_hbm [thread:$0]  %s525, 128, %s522, %s510
        $region44: #{head_forward.3} parent=27 // pred_fallthru
          _
      $region28: #{head_forward.3} parent=5 // pred_fallthru
        _
      %p528 = scmp.le.s32.totalorder 2, %s11
      // Predicated region
      $region45: #{head_forward.3} parent=5 // pred_check
        %p529 = pneg %p528
      $region46: #{head_forward.3} parent=5 // pred_check_branch
        %531 = sbr.rel (%p529) target = $region48
      $region47: #{head_forward.3} parent=5 // pred_region
        %s532 = ssub.s32 %s11, 2
        // Predicated region
        $region49: #{head_forward.3} parent=47 // pred_check
          %p533 = pneg %p121
        $region50: #{head_forward.3} parent=47 // pred_check_branch
          %535 = sbr.rel (%p533) target = $region52
        $region51: #{head_forward.3} parent=47 // pred_region
          %s536 = sand.u32 %s106, 1
          %s537 = scalar_lea.sflag [#allocation6], %s536
          %s538 = sand.u32 %s106, 1
          %s539 = smul.addr %s538, 8
          %s540 = scalar_lea.vmem [#allocation5], %s539
          %541 = dma.done %s537, 128
        $region52: #{head_forward.3} parent=47 // pred_fallthru
          _
      $region48: #{head_forward.3} parent=5 // pred_fallthru
        _
    $region6: #{head_forward.3} parent=1 // loop_footer
      %s15 = sadd.s32 1, %s11
    $region7: #{head_forward.3} parent=1 // loop_footer_branch
      %10 = sbr.rel target = $region3
    $region8: #{head_forward.3} parent=1 // loop_exit
      _
    %542 = vsyncpa [#allocation6], 1
    %s543 = scalar_lea.sflag [#allocation6], 1
    %544 = vsyncpa %s543, 1

</llo_original>
